<compile_context>
chip_gen: v6e
topology: v6e:2x2x1
jax: 0.10.0
libtpu: 0.0.40
codegen_flags: <defaults>
</compile_context>

<pallas_src>
import jax
import jax.numpy as jnp
from jax.experimental import pallas as pl
from jax.experimental.pallas import tpu as pltpu

LANE = 128


def _round_up(x, m):
    return ((x + m - 1) // m) * m


def _pad_to(a, shape):
    pads = [(0, t - s) for s, t in zip(a.shape, shape)]
    return jnp.pad(a, pads)


# --------------------------------------------------------------------------
# Pallas kernel: one block-diagonal batch slab per grid step.
#   adj_ref: [R, R]  bf16 block-diag adjacency for this slab's graphs
#   x_ref:   [R, Dp] bf16 stacked node features for this slab
#   w1_ref:  [Dp, Hp] bf16   b1_ref: [1, Hp] f32
#   w2_ref:  [Hp, Op] bf16   b2_ref: [1, Op] f32
#   o_ref:   [R, Op]  f32
# All four matmuls are lane/sublane-dense MXU ops with f32 accumulation.
# --------------------------------------------------------------------------
def _gnn_encoder_kernel(adj_ref, x_ref, w1_ref, b1_ref, w2_ref, b2_ref, o_ref):
    adj = adj_ref[...]                                                    # [R, R] bf16

    # Layer 1 (reassociated): h = relu(adj @ (x @ W1) + b1)
    xw1 = jnp.dot(x_ref[...], w1_ref[...],
                  preferred_element_type=jnp.float32)                     # [R, Hp] f32
    h = jnp.dot(adj, xw1.astype(jnp.bfloat16),
                preferred_element_type=jnp.float32)                       # [R, Hp] f32
    h = jnp.maximum(h + b1_ref[...], 0.0)

    # Layer 2 (reassociated): out = adj @ (h @ W2) + b2
    hw2 = jnp.dot(h.astype(jnp.bfloat16), w2_ref[...],
                  preferred_element_type=jnp.float32)                     # [R, Op] f32
    out = jnp.dot(adj, hw2.astype(jnp.bfloat16),
                  preferred_element_type=jnp.float32)                     # [R, Op] f32
    o_ref[...] = (out + b2_ref[...]).astype(o_ref.dtype)


def gnn_encoder_forward(adj_blocks, x_flat, w1, b1, w2, b2, output_dim):
    """Batched GNN encoder with block-diagonal adjacency.

    adj_blocks: [G, R, R]  bf16 block-diag normalized adjacency per row slab
    x_flat:     [G*R, Dp]  bf16 stacked, lane-padded node features
    w1: [Dp, Hp] bf16   b1: [1, Hp] f32
    w2: [Hp, Op] bf16   b2: [1, Op] f32
    Returns [G*R, output_dim] f32.
    """
    G, R, _ = adj_blocks.shape
    total_rows, Dp = x_flat.shape
    assert total_rows == G * R
    Hp = w1.shape[1]
    Op = w2.shape[1]

    flops = 2 * total_rows * (Dp * Hp + R * Hp + Hp * Op + R * Op)
    bytes_accessed = (adj_blocks.size * 2 + x_flat.size * 2
                      + w1.size * 2 + b1.size * 4 + w2.size * 2 + b2.size * 4
                      + total_rows * Op * 4)

    out = pl.pallas_call(
        _gnn_encoder_kernel,
        out_shape=jax.ShapeDtypeStruct((total_rows, Op), jnp.float32),
        grid=(G,),
        in_specs=[
            pl.BlockSpec((None, R, R), lambda g: (g, 0, 0)),   # per-slab block-diag adj
            pl.BlockSpec((R, Dp), lambda g: (g, 0)),           # per-slab features
            pl.BlockSpec((Dp, Hp), lambda g: (0, 0)),          # W1 (resident)
            pl.BlockSpec((1, Hp), lambda g: (0, 0)),           # b1 (resident)
            pl.BlockSpec((Hp, Op), lambda g: (0, 0)),          # W2 (resident)
            pl.BlockSpec((1, Op), lambda g: (0, 0)),           # b2 (resident)
        ],
        out_specs=pl.BlockSpec((R, Op), lambda g: (g, 0)),     # lane-dense store
        compiler_params=pltpu.CompilerParams(
            dimension_semantics=("parallel",),                 # 2 slabs -> 2 TCs on v7x
        ),
        cost_estimate=pl.CostEstimate(flops=int(flops), transcendentals=0,
                                      bytes_accessed=int(bytes_accessed)),
    )(adj_blocks, x_flat, w1, b1, w2, b2)
    # Keep the sub-128 slice outside the kernel (avoids masked vst.msk stores).
    return out[:, :output_dim]


# --------------------------------------------------------------------------
# Glue: build normalized dense adjacency from edge_index (plain JAX)
# --------------------------------------------------------------------------
def build_normalized_adjacency(edge_index, num_nodes):
    src, dst = edge_index[0], edge_index[1]
    adj = jnp.zeros((num_nodes, num_nodes), jnp.float32)
    adj = adj.at[dst, src].set(1.0)                       # message src -> dst
    # Self loops without double counting explicit (i, i) edges.
    adj = jnp.maximum(adj, jnp.eye(num_nodes, dtype=jnp.float32))
    deg = jnp.sum(adj, axis=1)
    d_inv_sqrt = 1.0 / jnp.sqrt(jnp.maximum(deg, 1e-12))
    return adj * d_inv_sqrt[:, None] * d_inv_sqrt[None, :]


def block_diagonalize(adj_b, graphs_per_block):
    """[B, N, N] per-graph adjacency -> [G, gpb*N, gpb*N] block-diag slabs."""
    B, N, _ = adj_b.shape
    assert B % graphs_per_block == 0
    G = B // graphs_per_block
    adj_g = adj_b.reshape(G, graphs_per_block, N, N)
    eye = jnp.eye(graphs_per_block, dtype=adj_b.dtype)
    bd = jnp.einsum("ij,gikl->gikjl", eye, adj_g)
    return bd.reshape(G, graphs_per_block * N, graphs_per_block * N)


# --------------------------------------------------------------------------
# Pure-JAX f32 reference (per-graph, unpadded operands)
# --------------------------------------------------------------------------
def gnn_encoder_ref(adj_b, x_b, w1, b1, w2, b2):
    h = jnp.maximum(jnp.einsum("bij,bjk,kl->bil", adj_b, x_b, w1) + b1, 0.0)
    return jnp.einsum("bij,bjk,kl->bil", adj_b, h, w2) + b2


if __name__ == "__main__":
    key = jax.random.PRNGKey(0)
    k_x, k_e, k_w1, k_b1, k_w2, k_b2 = jax.random.split(key, 6)

    batch_graphs = 16
    num_nodes = 16
    num_edges = 32
    input_dim = 8
    hidden_dim = 32
    output_dim = 16

    # 128 rows per grid step -> 8 graphs/slab, grid=(2,) (one slab per v7x TC).
    rows_per_block = 128
    graphs_per_block = rows_per_block // num_nodes
    num_blocks = batch_graphs // graphs_per_block
    total_rows = batch_graphs * num_nodes

    # Lane-dense padded feature dims.
    d_in_p = _round_up(input_dim, LANE)
    d_hid_p = _round_up(hidden_dim, LANE)
    d_out_p = _round_up(output_dim, LANE)

    # Deterministic synthetic batch of graphs.
    x = jax.random.normal(k_x, (batch_graphs, num_nodes, input_dim), jnp.float32)
    edge_index = jax.random.randint(
        k_e, (batch_graphs, 2, num_edges), 0, num_nodes, dtype=jnp.int32)

    # Deterministic synthetic parameters (shapes from __init__ dims).
    w1 = jax.random.normal(k_w1, (input_dim, hidden_dim), jnp.float32) * 0.1
    b1 = jax.random.normal(k_b1, (1, hidden_dim), jnp.float32) * 0.1
    w2 = jax.random.normal(k_w2, (hidden_dim, output_dim), jnp.float32) * 0.1
    b2 = jax.random.normal(k_b2, (1, output_dim), jnp.float32) * 0.1

    # Per-graph normalized adjacency, then block-diagonal slabs (bf16).
    adj = jax.vmap(build_normalized_adjacency, in_axes=(0, None))(
        edge_index, num_nodes)                                        # [B, N, N] f32
    adj_blocks = block_diagonalize(adj, graphs_per_block).astype(jnp.bfloat16)

    # Batch folded into M: stacked, lane-padded, bf16 features.
    x_flat = _pad_to(x.reshape(total_rows, input_dim),
                     (total_rows, d_in_p)).astype(jnp.bfloat16)
    w1_p = _pad_to(w1, (d_in_p, d_hid_p)).astype(jnp.bfloat16)
    b1_p = _pad_to(b1, (1, d_hid_p)).astype(jnp.float32)
    w2_p = _pad_to(w2, (d_hid_p, d_out_p)).astype(jnp.bfloat16)
    b2_p = _pad_to(b2, (1, d_out_p)).astype(jnp.float32)

    out_flat = gnn_encoder_forward(adj_blocks, x_flat, w1_p, b1_p, w2_p, b2_p,
                                   output_dim)
    out_flat = jax.block_until_ready(out_flat)
    out = out_flat.reshape(batch_graphs, num_nodes, output_dim)

    ref = gnn_encoder_ref(adj, x, w1, b1, w2, b2)
    assert out.shape == (batch_graphs, num_nodes, output_dim)
    max_err = float(jnp.max(jnp.abs(out - ref)))
    assert max_err < 2e-2, f"mismatch vs reference (max abs err {max_err})"

    print("KERNEL_OK")
</pallas_src>

<mosaic_0001>
module attributes {stable_mosaic.version = 11 : i64} {
  func.func @_gnn_encoder_kernel(%arg0: i32, %arg1: memref<1x128x128xbf16, #tpu.memory_space<vmem>>, %arg2: memref<128x128xbf16, #tpu.memory_space<vmem>>, %arg3: memref<128x128xbf16, #tpu.memory_space<vmem>>, %arg4: memref<1x128xf32, #tpu.memory_space<vmem>>, %arg5: memref<128x128xbf16, #tpu.memory_space<vmem>>, %arg6: memref<1x128xf32, #tpu.memory_space<vmem>>, %arg7: memref<128x128xf32, #tpu.memory_space<vmem>>) attributes {dimension_semantics = [#tpu.dimension_semantics<parallel>], iteration_bounds = array<i64: 2>, scalar_prefetch = 0 : i64, scratch_operands = 0 : i64, tpu.core_type = #tpu.core_type<tc>, window_params = [{transform_indices = @transform_0, window_bounds = array<i64: 1, 128, 128>}, {transform_indices = @transform_1, window_bounds = array<i64: 128, 128>}, {pipeline_mode = #tpu.pipeline_mode<synchronous>, transform_indices = @transform_2, window_bounds = array<i64: 128, 128>}, {pipeline_mode = #tpu.pipeline_mode<synchronous>, transform_indices = @transform_3, window_bounds = array<i64: 1, 128>}, {pipeline_mode = #tpu.pipeline_mode<synchronous>, transform_indices = @transform_4, window_bounds = array<i64: 128, 128>}, {pipeline_mode = #tpu.pipeline_mode<synchronous>, transform_indices = @transform_5, window_bounds = array<i64: 1, 128>}, {transform_indices = @transform_6, window_bounds = array<i64: 128, 128>}]} {
    %c0 = arith.constant 0 : index
    %c0_0 = arith.constant 0 : index
    %c0_1 = arith.constant 0 : index
    %0 = vector.load %arg1[%c0, %c0_0, %c0_1] : memref<1x128x128xbf16, #tpu.memory_space<vmem>>, vector<1x128x128xbf16>
    %1 = vector.shape_cast %0 : vector<1x128x128xbf16> to vector<128x128xbf16>
    %c0_2 = arith.constant 0 : index
    %c0_3 = arith.constant 0 : index
    %2 = vector.load %arg2[%c0_2, %c0_3] : memref<128x128xbf16, #tpu.memory_space<vmem>>, vector<128x128xbf16>
    %c0_4 = arith.constant 0 : index
    %c0_5 = arith.constant 0 : index
    %3 = vector.load %arg3[%c0_4, %c0_5] : memref<128x128xbf16, #tpu.memory_space<vmem>>, vector<128x128xbf16>
    %cst = arith.constant dense<0.000000e+00> : vector<128x128xf32>
    %4 = tpu.matmul %2, %3, %cst {dimension_numbers = #tpu.dot_dimension_numbers<[1], [0], [0], [1], [0, 0, 1, 1], [], []>} : vector<128x128xbf16>, vector<128x128xbf16>, vector<128x128xf32> -> vector<128x128xf32>
    %5 = arith.truncf %4 : vector<128x128xf32> to vector<128x128xbf16>
    %cst_6 = arith.constant dense<0.000000e+00> : vector<128x128xf32>
    %6 = tpu.matmul %1, %5, %cst_6 {dimension_numbers = #tpu.dot_dimension_numbers<[1], [0], [0], [1], [0, 0, 1, 1], [], []>} : vector<128x128xbf16>, vector<128x128xbf16>, vector<128x128xf32> -> vector<128x128xf32>
    %c0_7 = arith.constant 0 : index
    %c0_8 = arith.constant 0 : index
    %7 = vector.load %arg4[%c0_7, %c0_8] : memref<1x128xf32, #tpu.memory_space<vmem>>, vector<1x128xf32>
    %8 = vector.broadcast %7 : vector<1x128xf32> to vector<128x128xf32>
    %9 = arith.addf %6, %8 : vector<128x128xf32>
    %cst_9 = arith.constant 0.000000e+00 : f32
    %10 = vector.broadcast %cst_9 : f32 to vector<128x128xf32>
    %11 = arith.maximumf %9, %10 : vector<128x128xf32>
    %12 = arith.truncf %11 : vector<128x128xf32> to vector<128x128xbf16>
    %c0_10 = arith.constant 0 : index
    %c0_11 = arith.constant 0 : index
    %13 = vector.load %arg5[%c0_10, %c0_11] : memref<128x128xbf16, #tpu.memory_space<vmem>>, vector<128x128xbf16>
    %cst_12 = arith.constant dense<0.000000e+00> : vector<128x128xf32>
    %14 = tpu.matmul %12, %13, %cst_12 {dimension_numbers = #tpu.dot_dimension_numbers<[1], [0], [0], [1], [0, 0, 1, 1], [], []>} : vector<128x128xbf16>, vector<128x128xbf16>, vector<128x128xf32> -> vector<128x128xf32>
    %15 = arith.truncf %14 : vector<128x128xf32> to vector<128x128xbf16>
    %cst_13 = arith.constant dense<0.000000e+00> : vector<128x128xf32>
    %16 = tpu.matmul %1, %15, %cst_13 {dimension_numbers = #tpu.dot_dimension_numbers<[1], [0], [0], [1], [0, 0, 1, 1], [], []>} : vector<128x128xbf16>, vector<128x128xbf16>, vector<128x128xf32> -> vector<128x128xf32>
    %c0_14 = arith.constant 0 : index
    %c0_15 = arith.constant 0 : index
    %17 = vector.load %arg6[%c0_14, %c0_15] : memref<1x128xf32, #tpu.memory_space<vmem>>, vector<1x128xf32>
    %18 = vector.broadcast %17 : vector<1x128xf32> to vector<128x128xf32>
    %19 = arith.addf %16, %18 : vector<128x128xf32>
    %c0_16 = arith.constant 0 : index
    %c0_17 = arith.constant 0 : index
    %20 = vector.load %arg7[%c0_16, %c0_17] : memref<128x128xf32, #tpu.memory_space<vmem>>, vector<128x128xf32>
    tpu.vector_store %arg7[%c0_16, %c0_17], %19 {strides = array<i32>} : memref<128x128xf32, #tpu.memory_space<vmem>>, vector<128x128xf32>,
    return
  }
  func.func @transform_0(%arg0: i32) -> (i32, i32, i32) {
    %c0_i32 = arith.constant 0 : i32
    %c0_i32_0 = arith.constant 0 : i32
    %c0_i32_1 = arith.constant 0 : i32
    return %arg0, %c0_i32, %c0_i32_0 : i32, i32, i32
  }
  func.func @transform_1(%arg0: i32) -> (i32, i32) {
    %c0_i32 = arith.constant 0 : i32
    %c0_i32_0 = arith.constant 0 : i32
    return %arg0, %c0_i32 : i32, i32
  }
  func.func @transform_2(%arg0: i32) -> (i32, i32) {
    %c0_i32 = arith.constant 0 : i32
    %c0_i32_0 = arith.constant 0 : i32
    %c0_i32_1 = arith.constant 0 : i32
    return %c0_i32, %c0_i32_0 : i32, i32
  }
  func.func @transform_3(%arg0: i32) -> (i32, i32) {
    %c0_i32 = arith.constant 0 : i32
    %c0_i32_0 = arith.constant 0 : i32
    %c0_i32_1 = arith.constant 0 : i32
    return %c0_i32, %c0_i32_0 : i32, i32
  }
  func.func @transform_4(%arg0: i32) -> (i32, i32) {
    %c0_i32 = arith.constant 0 : i32
    %c0_i32_0 = arith.constant 0 : i32
    %c0_i32_1 = arith.constant 0 : i32
    return %c0_i32, %c0_i32_0 : i32, i32
  }
  func.func @transform_5(%arg0: i32) -> (i32, i32) {
    %c0_i32 = arith.constant 0 : i32
    %c0_i32_0 = arith.constant 0 : i32
    %c0_i32_1 = arith.constant 0 : i32
    return %c0_i32, %c0_i32_0 : i32, i32
  }
  func.func @transform_6(%arg0: i32) -> (i32, i32) {
    %c0_i32 = arith.constant 0 : i32
    %c0_i32_0 = arith.constant 0 : i32
    return %arg0, %c0_i32 : i32, i32
  }
}

</mosaic_0001>

<llo_original>
// kernel: tpu_custom_call.1
$region0: #{tpu_custom_call.1}
  #allocation0 [shape = 'u32[]', space=smem, size = 0x4, offset = 0x4, fixed_abs, tag = 'smem constant byte address 0x4 - core index']
  #allocation1 [shape = 'u32[144,128]{1,0:T(1,128)}', space=vmem, size = 0x12000, scoped, tag = 'internal scratch']
  %s0 = inlined_call_operand.hbm [shape: bf16[2,128,128], index: 0, kind: input, shape index: {}]
  %s1 = inlined_call_operand.hbm [shape: bf16[256,128], index: 1, kind: input, shape index: {}]
  %s2 = inlined_call_operand.hbm [shape: bf16[128,128], index: 2, kind: input, shape index: {}]
  %s3 = inlined_call_operand.vmem [shape: f32[1,128], index: 3, kind: input, shape index: {}]
  %s4 = inlined_call_operand.hbm [shape: bf16[128,128], index: 4, kind: input, shape index: {}]
  %s5 = inlined_call_operand.vmem [shape: f32[1,128], index: 5, kind: input, shape index: {}]
  %s6 = inlined_call_operand.hbm [shape: f32[256,128], index: 6, kind: output, shape index: {}]
  %s7 = sld [smem:[#allocation0]]
  $region73: #{tpu_custom_call.1} parent=0
    _
  %s9 = ssub.s32 1, %s7
  %s10 = scalar_select 0, %s9, %s7
  $region1: #{tpu_custom_call.1} parent=0
    #allocation2 [shape = 'u8[65536]{0}', space=vmem, size = 0x10000, scoped, tag = 'input window, operand 0']
    #allocation3 [shape = 's32[2]{0}', space=sflag, size = 0x8, scoped, tag = 'scoped memory for tpu_custom_call.1']
    #allocation4 [shape = 's32[2]{0}', space=sflag, size = 0x8, scoped, tag = 'scoped memory for tpu_custom_call.1']
    #allocation5 [shape = 'u8[65536]{0}', space=vmem, size = 0x10000, scoped, tag = 'input window, operand 1']
    #allocation6 [shape = 's32[2]{0}', space=sflag, size = 0x8, scoped, tag = 'scoped memory for tpu_custom_call.1']
    #allocation7 [shape = 'u8[32768]{0}', space=vmem, size = 0x8000, scoped, tag = 'input window, operand 2, single buffered']
    #allocation8 [shape = 'u8[32768]{0}', space=vmem, size = 0x8000, scoped, tag = 'input window, operand 4, single buffered']
    #allocation9 [shape = 's32[1]{0}', space=sflag, size = 0x4, scoped, tag = 'scoped memory for tpu_custom_call.1']
    #allocation10 [shape = 'u8[131072]{0}', space=vmem, size = 0x20000, scoped, tag = 'output window, operand 0']
    %11 = vsyncpa [#allocation3], 0
    %s12 = scalar_lea.sflag [#allocation3], 1
    %13 = vsyncpa %s12, 0
    %14 = vsyncpa [#allocation6], 0
    %s15 = scalar_lea.sflag [#allocation6], 1
    %16 = vsyncpa %s15, 0
    %17 = vsyncpa [#allocation9], 0
    %18 = vsyncpa [#allocation4], 0
    %s19 = scalar_lea.sflag [#allocation4], 1
    %20 = vsyncpa %s19, 0
    loop: start=0, step=1, limit=4
    $region2: #{tpu_custom_call.1} parent=1 // loop_pre_header
      _
    $region3: #{tpu_custom_call.1} parent=1 // loop_header
      %s22 = sphi 0, %s26
      %p23 = scmp.ge.s32.totalorder %s22, 4
      %s32 = sphi 0, %s34
      %s35 = sphi 0, %s32
      %s36 = sphi 0, %s35
      %s52 = sphi 0, %s36
      %s58 = sphi 0, %s60
      %s61 = sphi 0, %s58
      %s62 = sphi 0, %s61
      %s78 = sphi 0, %s62
      %s82 = sphi 0, %s82
      %s84 = sphi 0, %s82
      %s85 = sphi 0, %s84
      %s99 = sphi 0, %s85
      %s103 = sphi 0, %s103
      %s105 = sphi 0, %s103
      %s106 = sphi 0, %s105
      %s120 = sphi 0, %s106
      %s124 = sphi 0, %s124
      %s126 = sphi 0, %s124
      %s127 = sphi 0, %s126
      %s141 = sphi 0, %s127
      %s145 = sphi 0, %s145
      %s147 = sphi 0, %s145
      %s148 = sphi 0, %s147
      %s162 = sphi 0, %s148
      %s168 = sphi 0, %s170
      %s171 = sphi 0, %s168
      %s172 = sphi 0, %s171
      %s188 = sphi 0, %s172
    $region4: #{tpu_custom_call.1} parent=1 // loop_header_branch
      %25 = sbr.rel (%p23) target = $region8
    $region5: #{tpu_custom_call.1} parent=1 // loop_body
      %s27 = ssub.s32 %s22, 1
      %s28 = ssub.s32 %s22, 2
      %s29 = sadd.s32 %s22, 1
      %s30 = ssub.s32 %s22, %s29
      %p31 = scmp.eq.s32.totalorder %s30, 0
      %s33 = sadd.s32 %s32, 1
      %s34 = scalar_select %p31, %s32, %s33
      %p37 = pneg %p31
      %p38 = scmp.eq.s32.totalorder %s22, 1
      %p39 = por %p37, %p38
      %p40 = scmp.ne.s32.totalorder %s32, %s35
      %p41 = scmp.eq.s32.totalorder %s22, 0
      %p42 = por %p40, %p41
      %p43 = scmp.ne.s32.totalorder %s32, %s35
      %p44 = scmp.eq.s32.totalorder %s27, 1
      %p45 = por %p43, %p44
      %p46 = scmp.ne.s32.totalorder %s35, %s36
      %p47 = scmp.eq.s32.totalorder %s27, 0
      %p48 = por %p46, %p47
      %p49 = scmp.ne.s32.totalorder %s35, %s36
      %p50 = scmp.eq.s32.totalorder %s28, 1
      %p51 = por %p49, %p50
      %p53 = scmp.ne.s32.totalorder %s36, %s52
      %p54 = scmp.eq.s32.totalorder %s28, 0
      %p55 = por %p53, %p54
      %s56 = ssub.s32 %s22, %s29
      %p57 = scmp.eq.s32.totalorder %s56, 0
      %s59 = sadd.s32 %s58, 1
      %s60 = scalar_select %p57, %s58, %s59
      %p63 = pneg %p57
      %p64 = scmp.eq.s32.totalorder %s22, 1
      %p65 = por %p63, %p64
      %p66 = scmp.ne.s32.totalorder %s58, %s61
      %p67 = scmp.eq.s32.totalorder %s22, 0
      %p68 = por %p66, %p67
      %p69 = scmp.ne.s32.totalorder %s58, %s61
      %p70 = scmp.eq.s32.totalorder %s27, 1
      %p71 = por %p69, %p70
      %p72 = scmp.ne.s32.totalorder %s61, %s62
      %p73 = scmp.eq.s32.totalorder %s27, 0
      %p74 = por %p72, %p73
      %p75 = scmp.ne.s32.totalorder %s61, %s62
      %p76 = scmp.eq.s32.totalorder %s28, 1
      %p77 = por %p75, %p76
      %p79 = scmp.ne.s32.totalorder %s62, %s78
      %p80 = scmp.eq.s32.totalorder %s28, 0
      %p81 = por %p79, %p80
      %s83 = sadd.s32 %s82, 1
      %p86 = scmp.eq.s32.totalorder %s22, 1
      %p87 = scmp.ne.s32.totalorder %s82, %s84
      %p88 = scmp.eq.s32.totalorder %s22, 0
      %p89 = por %p87, %p88
      %p90 = scmp.ne.s32.totalorder %s82, %s84
      %p91 = scmp.eq.s32.totalorder %s27, 1
      %p92 = por %p90, %p91
      %p93 = scmp.ne.s32.totalorder %s84, %s85
      %p94 = scmp.eq.s32.totalorder %s27, 0
      %p95 = por %p93, %p94
      %p96 = scmp.ne.s32.totalorder %s84, %s85
      %p97 = scmp.eq.s32.totalorder %s28, 1
      %p98 = por %p96, %p97
      %p100 = scmp.ne.s32.totalorder %s85, %s99
      %p101 = scmp.eq.s32.totalorder %s28, 0
      %p102 = por %p100, %p101
      %s104 = sadd.s32 %s103, 1
      %p107 = scmp.eq.s32.totalorder %s22, 1
      %p108 = scmp.ne.s32.totalorder %s103, %s105
      %p109 = scmp.eq.s32.totalorder %s22, 0
      %p110 = por %p108, %p109
      %p111 = scmp.ne.s32.totalorder %s103, %s105
      %p112 = scmp.eq.s32.totalorder %s27, 1
      %p113 = por %p111, %p112
      %p114 = scmp.ne.s32.totalorder %s105, %s106
      %p115 = scmp.eq.s32.totalorder %s27, 0
      %p116 = por %p114, %p115
      %p117 = scmp.ne.s32.totalorder %s105, %s106
      %p118 = scmp.eq.s32.totalorder %s28, 1
      %p119 = por %p117, %p118
      %p121 = scmp.ne.s32.totalorder %s106, %s120
      %p122 = scmp.eq.s32.totalorder %s28, 0
      %p123 = por %p121, %p122
      %s125 = sadd.s32 %s124, 1
      %p128 = scmp.eq.s32.totalorder %s22, 1
      %p129 = scmp.ne.s32.totalorder %s124, %s126
      %p130 = scmp.eq.s32.totalorder %s22, 0
      %p131 = por %p129, %p130
      %p132 = scmp.ne.s32.totalorder %s124, %s126
      %p133 = scmp.eq.s32.totalorder %s27, 1
      %p134 = por %p132, %p133
      %p135 = scmp.ne.s32.totalorder %s126, %s127
      %p136 = scmp.eq.s32.totalorder %s27, 0
      %p137 = por %p135, %p136
      %p138 = scmp.ne.s32.totalorder %s126, %s127
      %p139 = scmp.eq.s32.totalorder %s28, 1
      %p140 = por %p138, %p139
      %p142 = scmp.ne.s32.totalorder %s127, %s141
      %p143 = scmp.eq.s32.totalorder %s28, 0
      %p144 = por %p142, %p143
      %s146 = sadd.s32 %s145, 1
      %p149 = scmp.eq.s32.totalorder %s22, 1
      %p150 = scmp.ne.s32.totalorder %s145, %s147
      %p151 = scmp.eq.s32.totalorder %s22, 0
      %p152 = por %p150, %p151
      %p153 = scmp.ne.s32.totalorder %s145, %s147
      %p154 = scmp.eq.s32.totalorder %s27, 1
      %p155 = por %p153, %p154
      %p156 = scmp.ne.s32.totalorder %s147, %s148
      %p157 = scmp.eq.s32.totalorder %s27, 0
      %p158 = por %p156, %p157
      %p159 = scmp.ne.s32.totalorder %s147, %s148
      %p160 = scmp.eq.s32.totalorder %s28, 1
      %p161 = por %p159, %p160
      %p163 = scmp.ne.s32.totalorder %s148, %s162
      %p164 = scmp.eq.s32.totalorder %s28, 0
      %p165 = por %p163, %p164
      %s166 = ssub.s32 %s22, %s29
      %p167 = scmp.eq.s32.totalorder %s166, 0
      %s169 = sadd.s32 %s168, 1
      %s170 = scalar_select %p167, %s168, %s169
      %p173 = pneg %p167
      %p174 = scmp.eq.s32.totalorder %s22, 1
      %p175 = por %p173, %p174
      %p176 = scmp.ne.s32.totalorder %s168, %s171
      %p177 = scmp.eq.s32.totalorder %s22, 0
      %p178 = por %p176, %p177
      %p179 = scmp.ne.s32.totalorder %s168, %s171
      %p180 = scmp.eq.s32.totalorder %s27, 1
      %p181 = por %p179, %p180
      %p182 = scmp.ne.s32.totalorder %s171, %s172
      %p183 = scmp.eq.s32.totalorder %s27, 0
      %p184 = por %p182, %p183
      %p185 = scmp.ne.s32.totalorder %s171, %s172
      %p186 = scmp.eq.s32.totalorder %s28, 1
      %p187 = por %p185, %p186
      %p189 = scmp.ne.s32.totalorder %s172, %s188
      %p190 = scmp.eq.s32.totalorder %s28, 0
      %p191 = por %p189, %p190
      %p192 = scmp.le.s32.totalorder 1, %s22
      %p193 = scmp.lt.s32.totalorder %s22, 3
      %p194 = pnand %p192, %p193
      %p195 = pneg %p194
      // Predicated region
      $region9: #{tpu_custom_call.1} parent=5 // pred_check
        _
      $region10: #{tpu_custom_call.1} parent=5 // pred_check_branch
        %197 = sbr.rel (%p194) target = $region12
      $region11: #{tpu_custom_call.1} parent=5 // pred_region
        %s198 = ssub.s32 %s22, 1
        // Predicated region
        $region13: #{tpu_custom_call.1} parent=11 // pred_check
          %p199 = pneg %p95
        $region14: #{tpu_custom_call.1} parent=11 // pred_check_branch
          %201 = sbr.rel (%p199) target = $region16
        $region15: #{tpu_custom_call.1} parent=11 // pred_region
          %s203 = ssub.s32 1024, 1024
          %204 = vsyncadd [#allocation6], %s203
          %s205 = sshll.u32 [#allocation7], 4
          %s206 = int_to_ptr.vmem [resolvable:$true] %s205
          %211 = dma.hbm_to_vmem [thread:$0]  %s2, 1024, %s206, [#allocation6], 64, 64, 4
        $region16: #{tpu_custom_call.1} parent=11 // pred_fallthru
          _
        // Predicated region
        $region17: #{tpu_custom_call.1} parent=11 // pred_check
          %p212 = pneg %p116
        $region18: #{tpu_custom_call.1} parent=11 // pred_check_branch
          %214 = sbr.rel (%p212) target = $region20
        $region19: #{tpu_custom_call.1} parent=11 // pred_region
          _
        $region20: #{tpu_custom_call.1} parent=11 // pred_fallthru
          _
        // Predicated region
        $region21: #{tpu_custom_call.1} parent=11 // pred_check
          %p215 = pneg %p137
        $region22: #{tpu_custom_call.1} parent=11 // pred_check_branch
          %217 = sbr.rel (%p215) target = $region24
        $region23: #{tpu_custom_call.1} parent=11 // pred_region
          %s219 = ssub.s32 1024, 1024
          %220 = vsyncadd [#allocation9], %s219
          %s221 = sshll.u32 [#allocation8], 4
          %s222 = int_to_ptr.vmem [resolvable:$true] %s221
          %227 = dma.hbm_to_vmem [thread:$0]  %s4, 1024, %s222, [#allocation9], 64, 64, 4
        $region24: #{tpu_custom_call.1} parent=11 // pred_fallthru
          _
        // Predicated region
        $region25: #{tpu_custom_call.1} parent=11 // pred_check
          %p228 = pneg %p158
        $region26: #{tpu_custom_call.1} parent=11 // pred_check_branch
          %230 = sbr.rel (%p228) target = $region28
        $region27: #{tpu_custom_call.1} parent=11 // pred_region
          _
        $region28: #{tpu_custom_call.1} parent=11 // pred_fallthru
          _
      $region12: #{tpu_custom_call.1} parent=5 // pred_fallthru
        _
      %p231 = scmp.lt.s32.totalorder %s22, 2
      // Predicated region
      $region29: #{tpu_custom_call.1} parent=5 // pred_check
        %p232 = pneg %p231
      $region30: #{tpu_custom_call.1} parent=5 // pred_check_branch
        %234 = sbr.rel (%p232) target = $region32
      $region31: #{tpu_custom_call.1} parent=5 // pred_region
        // Predicated region
        $region33: #{tpu_custom_call.1} parent=31 // pred_check
          %p235 = pneg %p42
        $region34: #{tpu_custom_call.1} parent=31 // pred_check_branch
          %237 = sbr.rel (%p235) target = $region36
        $region35: #{tpu_custom_call.1} parent=31 // pred_region
          %s238 = sand.u32 %s32, 1
          %s239 = scalar_lea.sflag [#allocation3], %s238
          %s240 = sand.u32 %s32, 1
          %s241 = smul.addr %s240, 64
          %s242 = scalar_lea.vmem [#allocation2], %s241
          %s244 = ssub.s32 1024, 1024
          %245 = vsyncadd %s239, %s244
          %s246 = smul.addr %s22, 16
          %s247 = smul.addr %s246, 64
          %s248 = scalar_lea.hbm %s0, %s247
          %s249 = sshll.u32 %s242, 4
          %s250 = int_to_ptr.vmem [resolvable:$true] %s249
          %255 = dma.hbm_to_vmem [thread:$0]  %s248, 1024, %s250, %s239, 64, 64, 4
        $region36: #{tpu_custom_call.1} parent=31 // pred_fallthru
          _
        // Predicated region
        $region37: #{tpu_custom_call.1} parent=31 // pred_check
          %p256 = pneg %p68
        $region38: #{tpu_custom_call.1} parent=31 // pred_check_branch
          %258 = sbr.rel (%p256) target = $region40
        $region39: #{tpu_custom_call.1} parent=31 // pred_region
          %s259 = sand.u32 %s22, 1
          %s260 = scalar_lea.sflag [#allocation6], %s259
          %s261 = sand.u32 %s58, 1
          %s262 = smul.addr %s261, 64
          %s263 = scalar_lea.vmem [#allocation5], %s262
          %s264 = smul.u32 16, %s22
          %s266 = ssub.s32 1024, 1024
          %267 = vsyncadd %s260, %s266
          %s268 = smul.addr %s264, 64
          %s269 = scalar_lea.hbm %s1, %s268
          %s270 = sshll.u32 %s263, 4
          %s271 = int_to_ptr.vmem [resolvable:$true] %s270
          %276 = dma.hbm_to_vmem [thread:$0]  %s269, 1024, %s271, %s260, 64, 64, 4
        $region40: #{tpu_custom_call.1} parent=31 // pred_fallthru
          _
      $region32: #{tpu_custom_call.1} parent=5 // pred_fallthru
        _
      %p277 = scmp.le.s32.totalorder 1, %s22
      %p278 = scmp.lt.s32.totalorder %s22, 3
      %p279 = pnand %p277, %p278
      %p280 = pneg %p279
      // Predicated region
      $region41: #{tpu_custom_call.1} parent=5 // pred_check
        _
      $region42: #{tpu_custom_call.1} parent=5 // pred_check_branch
        %282 = sbr.rel (%p279) target = $region44
      $region43: #{tpu_custom_call.1} parent=5 // pred_region
        %s283 = ssub.s32 %s22, 1
        %s284 = sand.u32 %s35, 1
        %s285 = scalar_lea.sflag [#allocation3], %s284
        %s286 = sand.u32 %s35, 1
        %s287 = smul.addr %s286, 64
        %s288 = scalar_lea.vmem [#allocation2], %s287
        // Predicated region
        $region45: #{tpu_custom_call.1} parent=43 // pred_check
          %p289 = pneg %p48
        $region46: #{tpu_custom_call.1} parent=43 // pred_check_branch
          %291 = sbr.rel (%p289) target = $region48
        $region47: #{tpu_custom_call.1} parent=43 // pred_region
          %292 = dma.done %s285, 1024
        $region48: #{tpu_custom_call.1} parent=43 // pred_fallthru
          _
        %s293 = sand.u32 %s27, 1
        %s294 = scalar_lea.sflag [#allocation6], %s293
        %s295 = sand.u32 %s61, 1
        %s296 = smul.addr %s295, 64
        %s297 = scalar_lea.vmem [#allocation5], %s296
        // Predicated region
        $region49: #{tpu_custom_call.1} parent=43 // pred_check
          %p298 = pneg %p74
        $region50: #{tpu_custom_call.1} parent=43 // pred_check_branch
          %300 = sbr.rel (%p298) target = $region52
        $region51: #{tpu_custom_call.1} parent=43 // pred_region
          %301 = dma.done %s294, 1024
        $region52: #{tpu_custom_call.1} parent=43 // pred_fallthru
          _
        // Predicated region
        $region53: #{tpu_custom_call.1} parent=43 // pred_check
          %p302 = pneg %p95
        $region54: #{tpu_custom_call.1} parent=43 // pred_check_branch
          %304 = sbr.rel (%p302) target = $region56
        $region55: #{tpu_custom_call.1} parent=43 // pred_region
          %305 = dma.done [#allocation6], 1024
        $region56: #{tpu_custom_call.1} parent=43 // pred_fallthru
          _
        // Predicated region
        $region57: #{tpu_custom_call.1} parent=43 // pred_check
          %p306 = pneg %p137
        $region58: #{tpu_custom_call.1} parent=43 // pred_check_branch
          %308 = sbr.rel (%p306) target = $region60
        $region59: #{tpu_custom_call.1} parent=43 // pred_region
          %309 = dma.done [#allocation9], 1024
        $region60: #{tpu_custom_call.1} parent=43 // pred_fallthru
          _
        %s310 = sand.u32 %s35, 1
        %s311 = scalar_lea.sflag [#allocation3], %s310
        %s312 = sand.u32 %s35, 1
        %s313 = smul.addr %s312, 64
        %s314 = scalar_lea.vmem [#allocation2], %s313
        %p315 = pneg %p48
        %p316 = pneg %p45
        %s317 = sand.u32 %s27, 1
        %s318 = scalar_lea.sflag [#allocation6], %s317
        %s319 = sand.u32 %s61, 1
        %s320 = smul.addr %s319, 64
        %s321 = scalar_lea.vmem [#allocation5], %s320
        %p322 = pneg %p74
        %p323 = pneg %p71
        %p324 = pneg %p95
        %p325 = pneg %p92
        %p326 = pneg %p116
        %p327 = pneg %p113
        %p328 = pneg %p137
        %p329 = pneg %p134
        %p330 = pneg %p158
        %p331 = pneg %p155
        %p332 = pneg %p184
        %p333 = pneg %p181
        %s334 = sand.u32 %s171, 1
        %s335 = scalar_lea.sflag [#allocation4], %s334
        %s336 = sand.u32 %s171, 1
        %s337 = smul.addr %s336, 128
        %s338 = scalar_lea.vmem [#allocation10], %s337
        %s339 = smul.u32 16, %s27
        %s340 = smul.u32 16, %s27
        %v342 = vld [vmem:[%s288] sm:$0xf]
        %v343 = vld [vmem:[%s288 + $0x4] sm:$0xf]
        %v344 = vld [vmem:[%s288 + $0x8] sm:$0xf]
        %v345 = vld [vmem:[%s288 + $0xc] sm:$0xf]
        %v346 = vld [vmem:[%s288 + $0x10] sm:$0xf]
        %v347 = vld [vmem:[%s288 + $0x14] sm:$0xf]
        %v348 = vld [vmem:[%s288 + $0x18] sm:$0xf]
        %v349 = vld [vmem:[%s288 + $0x1c] sm:$0xf]
        %v350 = vld [vmem:[%s288 + $0x20] sm:$0xf]
        %v351 = vld [vmem:[%s288 + $0x24] sm:$0xf]
        %v352 = vld [vmem:[%s288 + $0x28] sm:$0xf]
        %v353 = vld [vmem:[%s288 + $0x2c] sm:$0xf]
        %v354 = vld [vmem:[%s288 + $0x30] sm:$0xf]
        %v355 = vld [vmem:[%s288 + $0x34] sm:$0xf]
        %v356 = vld [vmem:[%s288 + $0x38] sm:$0xf]
        %v357 = vld [vmem:[%s288 + $0x3c] sm:$0xf]
        %v358 = vld [vmem:[%s297] sm:$0xf]
        %v359 = vld [vmem:[%s297 + $0x4] sm:$0xf]
        %v360 = vld [vmem:[%s297 + $0x8] sm:$0xf]
        %v361 = vld [vmem:[%s297 + $0xc] sm:$0xf]
        %v362 = vld [vmem:[%s297 + $0x10] sm:$0xf]
        %v363 = vld [vmem:[%s297 + $0x14] sm:$0xf]
        %v364 = vld [vmem:[%s297 + $0x18] sm:$0xf]
        %v365 = vld [vmem:[%s297 + $0x1c] sm:$0xf]
        %v366 = vld [vmem:[%s297 + $0x20] sm:$0xf]
        %v367 = vld [vmem:[%s297 + $0x24] sm:$0xf]
        %v368 = vld [vmem:[%s297 + $0x28] sm:$0xf]
        %v369 = vld [vmem:[%s297 + $0x2c] sm:$0xf]
        %v370 = vld [vmem:[%s297 + $0x30] sm:$0xf]
        %v371 = vld [vmem:[%s297 + $0x34] sm:$0xf]
        %v372 = vld [vmem:[%s297 + $0x38] sm:$0xf]
        %v373 = vld [vmem:[%s297 + $0x3c] sm:$0xf]
        %v374 = vld [vmem:[#allocation7] sm:$0xf]
        %v375 = vld [vmem:[#allocation7 + $0x4] sm:$0xf]
        %v376 = vld [vmem:[#allocation7 + $0x8] sm:$0xf]
        %v377 = vld [vmem:[#allocation7 + $0xc] sm:$0xf]
        %v378 = vld [vmem:[#allocation7 + $0x10] sm:$0xf]
        %v379 = vld [vmem:[#allocation7 + $0x14] sm:$0xf]
        %v380 = vld [vmem:[#allocation7 + $0x18] sm:$0xf]
        %v381 = vld [vmem:[#allocation7 + $0x1c] sm:$0xf]
        %v382 = vld [vmem:[#allocation7 + $0x20] sm:$0xf]
        %v383 = vld [vmem:[#allocation7 + $0x24] sm:$0xf]
        %v384 = vld [vmem:[#allocation7 + $0x28] sm:$0xf]
        %v385 = vld [vmem:[#allocation7 + $0x2c] sm:$0xf]
        %v386 = vld [vmem:[#allocation7 + $0x30] sm:$0xf]
        %v387 = vld [vmem:[#allocation7 + $0x34] sm:$0xf]
        %v388 = vld [vmem:[#allocation7 + $0x38] sm:$0xf]
        %v389 = vld [vmem:[#allocation7 + $0x3c] sm:$0xf]
        %v406 = vunpack.c.l.b16 %v358
        %v407 = vunpack.c.l.b16 %v359
        %v408 = vunpack.c.l.b16 %v360
        %v409 = vunpack.c.l.b16 %v361
        %v410 = vunpack.c.l.b16 %v362
        %v411 = vunpack.c.l.b16 %v363
        %v412 = vunpack.c.l.b16 %v364
        %v413 = vunpack.c.l.b16 %v365
        %v414 = vunpack.c.l.b16 %v366
        %v415 = vunpack.c.l.b16 %v367
        %v416 = vunpack.c.l.b16 %v368
        %v417 = vunpack.c.l.b16 %v369
        %v418 = vunpack.c.l.b16 %v370
        %v419 = vunpack.c.l.b16 %v371
        %v420 = vunpack.c.l.b16 %v372
        %v421 = vunpack.c.l.b16 %v373
        %v422 = vpack.c.b16 %v407, %v406
        %v423 = vpack.c.b16 %v409, %v408
        %v424 = vpack.c.b16 %v411, %v410
        %v425 = vpack.c.b16 %v413, %v412
        %v426 = vpack.c.b16 %v415, %v414
        %v427 = vpack.c.b16 %v417, %v416
        %v428 = vpack.c.b16 %v419, %v418
        %v429 = vpack.c.b16 %v421, %v420
        %v454 = vunpack.c.l.b16 %v374
        %v455 = vunpack.c.l.b16 %v375
        %v456 = vunpack.c.l.b16 %v376
        %v457 = vunpack.c.l.b16 %v377
        %v458 = vunpack.c.l.b16 %v378
        %v459 = vunpack.c.l.b16 %v379
        %v460 = vunpack.c.l.b16 %v380
        %v461 = vunpack.c.l.b16 %v381
        %v462 = vunpack.c.l.b16 %v382
        %v463 = vunpack.c.l.b16 %v383
        %v464 = vunpack.c.l.b16 %v384
        %v465 = vunpack.c.l.b16 %v385
        %v466 = vunpack.c.l.b16 %v386
        %v467 = vunpack.c.l.b16 %v387
        %v468 = vunpack.c.l.b16 %v388
        %v469 = vunpack.c.l.b16 %v389
        %v470 = vpack.c.b16 %v455, %v454
        %v471 = vpack.c.b16 %v457, %v456
        %v472 = vpack.c.b16 %v459, %v458
        %v473 = vpack.c.b16 %v461, %v460
        %v474 = vpack.c.b16 %v463, %v462
        %v475 = vpack.c.b16 %v465, %v464
        %v476 = vpack.c.b16 %v467, %v466
        %v477 = vpack.c.b16 %v469, %v468
        %486 = vmatprep.subr.bf16.mxu0 0
        %487 = vmatpush1.bf16.msra.mxu0 %v477
        %488 = vmatprep.subr.bf16.mxu0 0
        %489 = vmatpush1.bf16.msra.mxu0 %v476
        %490 = vmatprep.subr.bf16.mxu0 0
        %491 = vmatpush1.bf16.msra.mxu0 %v475
        %492 = vmatprep.subr.bf16.mxu0 0
        %493 = vmatpush1.bf16.msra.mxu0 %v474
        %494 = vmatprep.subr.bf16.mxu0 0
        %495 = vmatpush1.bf16.msra.mxu0 %v473
        %496 = vmatprep.subr.bf16.mxu0 0
        %497 = vmatpush1.bf16.msra.mxu0 %v472
        %498 = vmatprep.subr.bf16.mxu0 0
        %499 = vmatpush1.bf16.msra.mxu0 %v471
        %500 = vmatprep.subr.bf16.mxu0 0
        %501 = vmatpush1.bf16.msra.mxu0 %v470
        %502 = vmatprep.subr.bf16.mxu0 0
        %503 = vmatpush2.bf16.msra.mxu0 0
        %504 = vmatprep.subr.bf16.mxu0 0
        %505 = vmatpush2.bf16.msra.mxu0 0
        %506 = vmatprep.subr.bf16.mxu0 0
        %507 = vmatpush2.bf16.msra.mxu0 0
        %508 = vmatprep.subr.bf16.mxu0 0
        %509 = vmatpush2.bf16.msra.mxu0 0
        %510 = vmatprep.subr.bf16.mxu0 0
        %511 = vmatpush2.bf16.msra.mxu0 0
        %512 = vmatprep.subr.bf16.mxu0 0
        %513 = vmatpush2.bf16.msra.mxu0 0
        %514 = vmatprep.subr.bf16.mxu0 0
        %515 = vmatpush2.bf16.msra.mxu0 0
        %516 = vmatprep.subr.bf16.mxu0 0
        %517 = vmatpush2.bf16.msra.mxu0 0
        %518 = vmatprep.mubr.bf16.mxu0 0
        %519 = vmatmul.mubr.bf16.gmra.mxu0 %v422
        %v520 = vpop.f32.mrf.mxu0
        %v521 = vadd.f32 0.0, %v520
        %v522 = vpop.f32.mrf.mxu0
        %v523 = vpop.f32.mrf.mxu0
        %v524 = vadd.f32 0.0, %v523
        %v525 = vpop.f32.mrf.mxu0
        %526 = vmatprep.mubr.bf16.mxu0 0
        %527 = vmatmul.mubr.bf16.gmra.mxu0 %v423
        %v528 = vpop.f32.mrf.mxu0
        %v529 = vadd.f32 0.0, %v528
        %v530 = vpop.f32.mrf.mxu0
        %v531 = vpop.f32.mrf.mxu0
        %v532 = vadd.f32 0.0, %v531
        %v533 = vpop.f32.mrf.mxu0
        %534 = vmatprep.mubr.bf16.mxu0 0
        %535 = vmatmul.mubr.bf16.gmra.mxu0 %v424
        %v536 = vpop.f32.mrf.mxu0
        %v537 = vadd.f32 0.0, %v536
        %v538 = vpop.f32.mrf.mxu0
        %v539 = vpop.f32.mrf.mxu0
        %v540 = vadd.f32 0.0, %v539
        %v541 = vpop.f32.mrf.mxu0
        %542 = vmatprep.mubr.bf16.mxu0 0
        %543 = vmatmul.mubr.bf16.gmra.mxu0 %v425
        %v544 = vpop.f32.mrf.mxu0
        %v545 = vadd.f32 0.0, %v544
        %v546 = vpop.f32.mrf.mxu0
        %v547 = vpop.f32.mrf.mxu0
        %v548 = vadd.f32 0.0, %v547
        %v549 = vpop.f32.mrf.mxu0
        %550 = vmatprep.mubr.bf16.mxu0 0
        %551 = vmatmul.mubr.bf16.gmra.mxu0 %v426
        %v552 = vpop.f32.mrf.mxu0
        %v553 = vadd.f32 0.0, %v552
        %v554 = vpop.f32.mrf.mxu0
        %v555 = vpop.f32.mrf.mxu0
        %v556 = vadd.f32 0.0, %v555
        %v557 = vpop.f32.mrf.mxu0
        %558 = vmatprep.mubr.bf16.mxu0 0
        %559 = vmatmul.mubr.bf16.gmra.mxu0 %v427
        %v560 = vpop.f32.mrf.mxu0
        %v561 = vadd.f32 0.0, %v560
        %v562 = vpop.f32.mrf.mxu0
        %v563 = vpop.f32.mrf.mxu0
        %v564 = vadd.f32 0.0, %v563
        %v565 = vpop.f32.mrf.mxu0
        %566 = vmatprep.mubr.bf16.mxu0 0
        %567 = vmatmul.mubr.bf16.gmra.mxu0 %v428
        %v568 = vpop.f32.mrf.mxu0
        %v569 = vadd.f32 0.0, %v568
        %v570 = vpop.f32.mrf.mxu0
        %v571 = vpop.f32.mrf.mxu0
        %v572 = vadd.f32 0.0, %v571
        %v573 = vpop.f32.mrf.mxu0
        %574 = vmatprep.mubr.bf16.mxu0 0
        %575 = vmatmul.mubr.bf16.gmra.mxu0 %v429
        %v576 = vpop.f32.mrf.mxu0
        %v577 = vadd.f32 0.0, %v576
        %v578 = vpop.f32.mrf.mxu0
        %v579 = vpop.f32.mrf.mxu0
        %v580 = vadd.f32 0.0, %v579
        %v581 = vpop.f32.mrf.mxu0
        %582 = vdwg.mxu0
        %v583 = vpack.c.bf16 %v524, %v521
        %v584 = vpack.c.bf16 %v532, %v529
        %v585 = vpack.c.bf16 %v540, %v537
        %v586 = vpack.c.bf16 %v548, %v545
        %v587 = vpack.c.bf16 %v556, %v553
        %v588 = vpack.c.bf16 %v564, %v561
        %v589 = vpack.c.bf16 %v572, %v569
        %v590 = vpack.c.bf16 %v580, %v577
        %v591 = vld [vmem:[%s3] sm:$0x1]
        %v593 = vlaneseq
        %v594 = vshrl.u32 %v593, 7
        %v595 = vsub.s32 0, %v594
        %v596 = vrot.slane %v591, %v595
        %v614 = vunpack.c.l.b16 %v342
        %v615 = vunpack.c.l.b16 %v343
        %v616 = vunpack.c.l.b16 %v344
        %v617 = vunpack.c.l.b16 %v345
        %v618 = vunpack.c.l.b16 %v346
        %v619 = vunpack.c.l.b16 %v347
        %v620 = vunpack.c.l.b16 %v348
        %v621 = vunpack.c.l.b16 %v349
        %v622 = vunpack.c.l.b16 %v350
        %v623 = vunpack.c.l.b16 %v351
        %v624 = vunpack.c.l.b16 %v352
        %v625 = vunpack.c.l.b16 %v353
        %v626 = vunpack.c.l.b16 %v354
        %v627 = vunpack.c.l.b16 %v355
        %v628 = vunpack.c.l.b16 %v356
        %v629 = vunpack.c.l.b16 %v357
        %v630 = vpack.c.b16 %v615, %v614
        %v631 = vpack.c.b16 %v617, %v616
        %v632 = vpack.c.b16 %v619, %v618
        %v633 = vpack.c.b16 %v621, %v620
        %v634 = vpack.c.b16 %v623, %v622
        %v635 = vpack.c.b16 %v625, %v624
        %v636 = vpack.c.b16 %v627, %v626
        %v637 = vpack.c.b16 %v629, %v628
        %646 = vmatprep.subr.bf16.mxu0 0
        %647 = vmatpush1.bf16.msra.mxu0 %v590
        %648 = vmatprep.subr.bf16.mxu0 0
        %649 = vmatpush1.bf16.msra.mxu0 %v589
        %650 = vmatprep.subr.bf16.mxu0 0
        %651 = vmatpush1.bf16.msra.mxu0 %v588
        %652 = vmatprep.subr.bf16.mxu0 0
        %653 = vmatpush1.bf16.msra.mxu0 %v587
        %654 = vmatprep.subr.bf16.mxu0 0
        %655 = vmatpush1.bf16.msra.mxu0 %v586
        %656 = vmatprep.subr.bf16.mxu0 0
        %657 = vmatpush1.bf16.msra.mxu0 %v585
        %658 = vmatprep.subr.bf16.mxu0 0
        %659 = vmatpush1.bf16.msra.mxu0 %v584
        %660 = vmatprep.subr.bf16.mxu0 0
        %661 = vmatpush1.bf16.msra.mxu0 %v583
        %662 = vmatprep.subr.bf16.mxu0 0
        %663 = vmatpush2.bf16.msra.mxu0 0
        %664 = vmatprep.subr.bf16.mxu0 0
        %665 = vmatpush2.bf16.msra.mxu0 0
        %666 = vmatprep.subr.bf16.mxu0 0
        %667 = vmatpush2.bf16.msra.mxu0 0
        %668 = vmatprep.subr.bf16.mxu0 0
        %669 = vmatpush2.bf16.msra.mxu0 0
        %670 = vmatprep.subr.bf16.mxu0 0
        %671 = vmatpush2.bf16.msra.mxu0 0
        %672 = vmatprep.subr.bf16.mxu0 0
        %673 = vmatpush2.bf16.msra.mxu0 0
        %674 = vmatprep.subr.bf16.mxu0 0
        %675 = vmatpush2.bf16.msra.mxu0 0
        %676 = vmatprep.subr.bf16.mxu0 0
        %677 = vmatpush2.bf16.msra.mxu0 0
        %678 = vmatprep.mubr.bf16.mxu0 0
        %679 = vmatmul.mubr.bf16.gmra.mxu0 %v630
        %v680 = vpop.f32.mrf.mxu0
        %v681 = vadd.f32 %v596, %v680
        %v682 = vpop.f32.mrf.mxu0
        %v683 = vpop.f32.mrf.mxu0
        %v684 = vadd.f32 %v596, %v683
        %v685 = vpop.f32.mrf.mxu0
        %686 = vmatprep.mubr.bf16.mxu0 0
        %687 = vmatmul.mubr.bf16.gmra.mxu0 %v631
        %v688 = vpop.f32.mrf.mxu0
        %v689 = vadd.f32 %v596, %v688
        %v690 = vpop.f32.mrf.mxu0
        %v691 = vpop.f32.mrf.mxu0
        %v692 = vadd.f32 %v596, %v691
        %v693 = vpop.f32.mrf.mxu0
        %694 = vmatprep.mubr.bf16.mxu0 0
        %695 = vmatmul.mubr.bf16.gmra.mxu0 %v632
        %v696 = vpop.f32.mrf.mxu0
        %v697 = vadd.f32 %v596, %v696
        %v698 = vpop.f32.mrf.mxu0
        %v699 = vpop.f32.mrf.mxu0
        %v700 = vadd.f32 %v596, %v699
        %v701 = vpop.f32.mrf.mxu0
        %702 = vmatprep.mubr.bf16.mxu0 0
        %703 = vmatmul.mubr.bf16.gmra.mxu0 %v633
        %v704 = vpop.f32.mrf.mxu0
        %v705 = vadd.f32 %v596, %v704
        %v706 = vpop.f32.mrf.mxu0
        %v707 = vpop.f32.mrf.mxu0
        %v708 = vadd.f32 %v596, %v707
        %v709 = vpop.f32.mrf.mxu0
        %710 = vmatprep.mubr.bf16.mxu0 0
        %711 = vmatmul.mubr.bf16.gmra.mxu0 %v634
        %v712 = vpop.f32.mrf.mxu0
        %v713 = vadd.f32 %v596, %v712
        %v714 = vpop.f32.mrf.mxu0
        %v715 = vpop.f32.mrf.mxu0
        %v716 = vadd.f32 %v596, %v715
        %v717 = vpop.f32.mrf.mxu0
        %718 = vmatprep.mubr.bf16.mxu0 0
        %719 = vmatmul.mubr.bf16.gmra.mxu0 %v635
        %v720 = vpop.f32.mrf.mxu0
        %v721 = vadd.f32 %v596, %v720
        %v722 = vpop.f32.mrf.mxu0
        %v723 = vpop.f32.mrf.mxu0
        %v724 = vadd.f32 %v596, %v723
        %v725 = vpop.f32.mrf.mxu0
        %726 = vmatprep.mubr.bf16.mxu0 0
        %727 = vmatmul.mubr.bf16.gmra.mxu0 %v636
        %v728 = vpop.f32.mrf.mxu0
        %v729 = vadd.f32 %v596, %v728
        %v730 = vpop.f32.mrf.mxu0
        %v731 = vpop.f32.mrf.mxu0
        %v732 = vadd.f32 %v596, %v731
        %v733 = vpop.f32.mrf.mxu0
        %734 = vmatprep.mubr.bf16.mxu0 0
        %735 = vmatmul.mubr.bf16.gmra.mxu0 %v637
        %v736 = vpop.f32.mrf.mxu0
        %v737 = vadd.f32 %v596, %v736
        %v738 = vpop.f32.mrf.mxu0
        %v739 = vpop.f32.mrf.mxu0
        %v740 = vadd.f32 %v596, %v739
        %v741 = vpop.f32.mrf.mxu0
        %742 = vdwg.mxu0
        %v743 = vmax.f32 %v681, 0.0
        %v744 = vmax.f32 %v684, 0.0
        %v745 = vmax.f32 %v689, 0.0
        %v746 = vmax.f32 %v692, 0.0
        %v747 = vmax.f32 %v697, 0.0
        %v748 = vmax.f32 %v700, 0.0
        %v749 = vmax.f32 %v705, 0.0
        %v750 = vmax.f32 %v708, 0.0
        %v751 = vmax.f32 %v713, 0.0
        %v752 = vmax.f32 %v716, 0.0
        %v753 = vmax.f32 %v721, 0.0
        %v754 = vmax.f32 %v724, 0.0
        %v755 = vmax.f32 %v729, 0.0
        %v756 = vmax.f32 %v732, 0.0
        %v757 = vmax.f32 %v737, 0.0
        %v758 = vmax.f32 %v740, 0.0
        %v759 = vpack.c.bf16 %v744, %v743
        %v760 = vpack.c.bf16 %v746, %v745
        %v761 = vpack.c.bf16 %v748, %v747
        %v762 = vpack.c.bf16 %v750, %v749
        %v763 = vpack.c.bf16 %v752, %v751
        %v764 = vpack.c.bf16 %v754, %v753
        %v765 = vpack.c.bf16 %v756, %v755
        %v766 = vpack.c.bf16 %v758, %v757
        %v767 = vld [vmem:[#allocation8] sm:$0xf]
        %v768 = vld [vmem:[#allocation8 + $0x4] sm:$0xf]
        %v769 = vld [vmem:[#allocation8 + $0x8] sm:$0xf]
        %v770 = vld [vmem:[#allocation8 + $0xc] sm:$0xf]
        %v771 = vld [vmem:[#allocation8 + $0x10] sm:$0xf]
        %v772 = vld [vmem:[#allocation8 + $0x14] sm:$0xf]
        %v773 = vld [vmem:[#allocation8 + $0x18] sm:$0xf]
        %v774 = vld [vmem:[#allocation8 + $0x1c] sm:$0xf]
        %v775 = vld [vmem:[#allocation8 + $0x20] sm:$0xf]
        %v776 = vld [vmem:[#allocation8 + $0x24] sm:$0xf]
        %v777 = vld [vmem:[#allocation8 + $0x28] sm:$0xf]
        %v778 = vld [vmem:[#allocation8 + $0x2c] sm:$0xf]
        %v779 = vld [vmem:[#allocation8 + $0x30] sm:$0xf]
        %v780 = vld [vmem:[#allocation8 + $0x34] sm:$0xf]
        %v781 = vld [vmem:[#allocation8 + $0x38] sm:$0xf]
        %v782 = vld [vmem:[#allocation8 + $0x3c] sm:$0xf]
        %v799 = vunpack.c.l.b16 %v767
        %v800 = vunpack.c.l.b16 %v768
        %v801 = vunpack.c.l.b16 %v769
        %v802 = vunpack.c.l.b16 %v770
        %v803 = vunpack.c.l.b16 %v771
        %v804 = vunpack.c.l.b16 %v772
        %v805 = vunpack.c.l.b16 %v773
        %v806 = vunpack.c.l.b16 %v774
        %v807 = vunpack.c.l.b16 %v775
        %v808 = vunpack.c.l.b16 %v776
        %v809 = vunpack.c.l.b16 %v777
        %v810 = vunpack.c.l.b16 %v778
        %v811 = vunpack.c.l.b16 %v779
        %v812 = vunpack.c.l.b16 %v780
        %v813 = vunpack.c.l.b16 %v781
        %v814 = vunpack.c.l.b16 %v782
        %v815 = vpack.c.b16 %v800, %v799
        %v816 = vpack.c.b16 %v802, %v801
        %v817 = vpack.c.b16 %v804, %v803
        %v818 = vpack.c.b16 %v806, %v805
        %v819 = vpack.c.b16 %v808, %v807
        %v820 = vpack.c.b16 %v810, %v809
        %v821 = vpack.c.b16 %v812, %v811
        %v822 = vpack.c.b16 %v814, %v813
        %831 = vmatprep.subr.bf16.mxu0 0
        %832 = vmatpush1.bf16.msra.mxu0 %v822
        %833 = vmatprep.subr.bf16.mxu0 0
        %834 = vmatpush1.bf16.msra.mxu0 %v821
        %835 = vmatprep.subr.bf16.mxu0 0
        %836 = vmatpush1.bf16.msra.mxu0 %v820
        %837 = vmatprep.subr.bf16.mxu0 0
        %838 = vmatpush1.bf16.msra.mxu0 %v819
        %839 = vmatprep.subr.bf16.mxu0 0
        %840 = vmatpush1.bf16.msra.mxu0 %v818
        %841 = vmatprep.subr.bf16.mxu0 0
        %842 = vmatpush1.bf16.msra.mxu0 %v817
        %843 = vmatprep.subr.bf16.mxu0 0
        %844 = vmatpush1.bf16.msra.mxu0 %v816
        %845 = vmatprep.subr.bf16.mxu0 0
        %846 = vmatpush1.bf16.msra.mxu0 %v815
        %847 = vmatprep.subr.bf16.mxu0 0
        %848 = vmatpush2.bf16.msra.mxu0 0
        %849 = vmatprep.subr.bf16.mxu0 0
        %850 = vmatpush2.bf16.msra.mxu0 0
        %851 = vmatprep.subr.bf16.mxu0 0
        %852 = vmatpush2.bf16.msra.mxu0 0
        %853 = vmatprep.subr.bf16.mxu0 0
        %854 = vmatpush2.bf16.msra.mxu0 0
        %855 = vmatprep.subr.bf16.mxu0 0
        %856 = vmatpush2.bf16.msra.mxu0 0
        %857 = vmatprep.subr.bf16.mxu0 0
        %858 = vmatpush2.bf16.msra.mxu0 0
        %859 = vmatprep.subr.bf16.mxu0 0
        %860 = vmatpush2.bf16.msra.mxu0 0
        %861 = vmatprep.subr.bf16.mxu0 0
        %862 = vmatpush2.bf16.msra.mxu0 0
        %863 = vmatprep.mubr.bf16.mxu0 0
        %864 = vmatmul.mubr.bf16.gmra.mxu0 %v759
        %v865 = vpop.f32.mrf.mxu0
        %v866 = vadd.f32 0.0, %v865
        %v867 = vpop.f32.mrf.mxu0
        %v868 = vpop.f32.mrf.mxu0
        %v869 = vadd.f32 0.0, %v868
        %v870 = vpop.f32.mrf.mxu0
        %871 = vmatprep.mubr.bf16.mxu0 0
        %872 = vmatmul.mubr.bf16.gmra.mxu0 %v760
        %v873 = vpop.f32.mrf.mxu0
        %v874 = vadd.f32 0.0, %v873
        %v875 = vpop.f32.mrf.mxu0
        %v876 = vpop.f32.mrf.mxu0
        %v877 = vadd.f32 0.0, %v876
        %v878 = vpop.f32.mrf.mxu0
        %879 = vmatprep.mubr.bf16.mxu0 0
        %880 = vmatmul.mubr.bf16.gmra.mxu0 %v761
        %v881 = vpop.f32.mrf.mxu0
        %v882 = vadd.f32 0.0, %v881
        %v883 = vpop.f32.mrf.mxu0
        %v884 = vpop.f32.mrf.mxu0
        %v885 = vadd.f32 0.0, %v884
        %v886 = vpop.f32.mrf.mxu0
        %887 = vmatprep.mubr.bf16.mxu0 0
        %888 = vmatmul.mubr.bf16.gmra.mxu0 %v762
        %v889 = vpop.f32.mrf.mxu0
        %v890 = vadd.f32 0.0, %v889
        %v891 = vpop.f32.mrf.mxu0
        %v892 = vpop.f32.mrf.mxu0
        %v893 = vadd.f32 0.0, %v892
        %v894 = vpop.f32.mrf.mxu0
        %895 = vmatprep.mubr.bf16.mxu0 0
        %896 = vmatmul.mubr.bf16.gmra.mxu0 %v763
        %v897 = vpop.f32.mrf.mxu0
        %v898 = vadd.f32 0.0, %v897
        %v899 = vpop.f32.mrf.mxu0
        %v900 = vpop.f32.mrf.mxu0
        %v901 = vadd.f32 0.0, %v900
        %v902 = vpop.f32.mrf.mxu0
        %903 = vmatprep.mubr.bf16.mxu0 0
        %904 = vmatmul.mubr.bf16.gmra.mxu0 %v764
        %v905 = vpop.f32.mrf.mxu0
        %v906 = vadd.f32 0.0, %v905
        %v907 = vpop.f32.mrf.mxu0
        %v908 = vpop.f32.mrf.mxu0
        %v909 = vadd.f32 0.0, %v908
        %v910 = vpop.f32.mrf.mxu0
        %911 = vmatprep.mubr.bf16.mxu0 0
        %912 = vmatmul.mubr.bf16.gmra.mxu0 %v765
        %v913 = vpop.f32.mrf.mxu0
        %v914 = vadd.f32 0.0, %v913
        %v915 = vpop.f32.mrf.mxu0
        %v916 = vpop.f32.mrf.mxu0
        %v917 = vadd.f32 0.0, %v916
        %v918 = vpop.f32.mrf.mxu0
        %919 = vmatprep.mubr.bf16.mxu0 0
        %920 = vmatmul.mubr.bf16.gmra.mxu0 %v766
        %v921 = vpop.f32.mrf.mxu0
        %v922 = vadd.f32 0.0, %v921
        %v923 = vpop.f32.mrf.mxu0
        %v924 = vpop.f32.mrf.mxu0
        %v925 = vadd.f32 0.0, %v924
        %v926 = vpop.f32.mrf.mxu0
        %927 = vdwg.mxu0
        %v928 = vpack.c.bf16 %v869, %v866
        %v929 = vpack.c.bf16 %v877, %v874
        %v930 = vpack.c.bf16 %v885, %v882
        %v931 = vpack.c.bf16 %v893, %v890
        %v932 = vpack.c.bf16 %v901, %v898
        %v933 = vpack.c.bf16 %v909, %v906
        %v934 = vpack.c.bf16 %v917, %v914
        %v935 = vpack.c.bf16 %v925, %v922
        %v936 = vld [vmem:[%s5] sm:$0x1]
        %v938 = vlaneseq
        %v939 = vshrl.u32 %v938, 7
        %v940 = vsub.s32 0, %v939
        %v941 = vrot.slane %v936, %v940
        %943 = vmatprep.subr.bf16.mxu0 0
        %944 = vmatpush1.bf16.msra.mxu0 %v935
        %945 = vmatprep.subr.bf16.mxu0 0
        %946 = vmatpush1.bf16.msra.mxu0 %v934
        %947 = vmatprep.subr.bf16.mxu0 0
        %948 = vmatpush1.bf16.msra.mxu0 %v933
        %949 = vmatprep.subr.bf16.mxu0 0
        %950 = vmatpush1.bf16.msra.mxu0 %v932
        %951 = vmatprep.subr.bf16.mxu0 0
        %952 = vmatpush1.bf16.msra.mxu0 %v931
        %953 = vmatprep.subr.bf16.mxu0 0
        %954 = vmatpush1.bf16.msra.mxu0 %v930
        %955 = vmatprep.subr.bf16.mxu0 0
        %956 = vmatpush1.bf16.msra.mxu0 %v929
        %957 = vmatprep.subr.bf16.mxu0 0
        %958 = vmatpush1.bf16.msra.mxu0 %v928
        %959 = vmatprep.subr.bf16.mxu0 0
        %960 = vmatpush2.bf16.msra.mxu0 0
        %961 = vmatprep.subr.bf16.mxu0 0
        %962 = vmatpush2.bf16.msra.mxu0 0
        %963 = vmatprep.subr.bf16.mxu0 0
        %964 = vmatpush2.bf16.msra.mxu0 0
        %965 = vmatprep.subr.bf16.mxu0 0
        %966 = vmatpush2.bf16.msra.mxu0 0
        %967 = vmatprep.subr.bf16.mxu0 0
        %968 = vmatpush2.bf16.msra.mxu0 0
        %969 = vmatprep.subr.bf16.mxu0 0
        %970 = vmatpush2.bf16.msra.mxu0 0
        %971 = vmatprep.subr.bf16.mxu0 0
        %972 = vmatpush2.bf16.msra.mxu0 0
        %973 = vmatprep.subr.bf16.mxu0 0
        %974 = vmatpush2.bf16.msra.mxu0 0
        %975 = vmatprep.mubr.bf16.mxu0 0
        %976 = vmatmul.mubr.bf16.gmra.mxu0 %v630
        %v977 = vpop.f32.mrf.mxu0
        %v978 = vadd.f32 %v941, %v977
        %v979 = vpop.f32.mrf.mxu0
        %v980 = vpop.f32.mrf.mxu0
        %v981 = vadd.f32 %v941, %v980
        %v982 = vpop.f32.mrf.mxu0
        %983 = vmatprep.mubr.bf16.mxu0 0
        %984 = vmatmul.mubr.bf16.gmra.mxu0 %v631
        %v985 = vpop.f32.mrf.mxu0
        %v986 = vadd.f32 %v941, %v985
        %v987 = vpop.f32.mrf.mxu0
        %v988 = vpop.f32.mrf.mxu0
        %v989 = vadd.f32 %v941, %v988
        %v990 = vpop.f32.mrf.mxu0
        %991 = vmatprep.mubr.bf16.mxu0 0
        %992 = vmatmul.mubr.bf16.gmra.mxu0 %v632
        %v993 = vpop.f32.mrf.mxu0
        %v994 = vadd.f32 %v941, %v993
        %v995 = vpop.f32.mrf.mxu0
        %v996 = vpop.f32.mrf.mxu0
        %v997 = vadd.f32 %v941, %v996
        %v998 = vpop.f32.mrf.mxu0
        %999 = vmatprep.mubr.bf16.mxu0 0
        %1000 = vmatmul.mubr.bf16.gmra.mxu0 %v633
        %v1001 = vpop.f32.mrf.mxu0
        %v1002 = vadd.f32 %v941, %v1001
        %v1003 = vpop.f32.mrf.mxu0
        %v1004 = vpop.f32.mrf.mxu0
        %v1005 = vadd.f32 %v941, %v1004
        %v1006 = vpop.f32.mrf.mxu0
        %1007 = vmatprep.mubr.bf16.mxu0 0
        %1008 = vmatmul.mubr.bf16.gmra.mxu0 %v634
        %v1009 = vpop.f32.mrf.mxu0
        %v1010 = vadd.f32 %v941, %v1009
        %v1011 = vpop.f32.mrf.mxu0
        %v1012 = vpop.f32.mrf.mxu0
        %v1013 = vadd.f32 %v941, %v1012
        %v1014 = vpop.f32.mrf.mxu0
        %1015 = vmatprep.mubr.bf16.mxu0 0
        %1016 = vmatmul.mubr.bf16.gmra.mxu0 %v635
        %v1017 = vpop.f32.mrf.mxu0
        %v1018 = vadd.f32 %v941, %v1017
        %v1019 = vpop.f32.mrf.mxu0
        %v1020 = vpop.f32.mrf.mxu0
        %v1021 = vadd.f32 %v941, %v1020
        %v1022 = vpop.f32.mrf.mxu0
        %1023 = vmatprep.mubr.bf16.mxu0 0
        %1024 = vmatmul.mubr.bf16.gmra.mxu0 %v636
        %v1025 = vpop.f32.mrf.mxu0
        %v1026 = vadd.f32 %v941, %v1025
        %v1027 = vpop.f32.mrf.mxu0
        %v1028 = vpop.f32.mrf.mxu0
        %v1029 = vadd.f32 %v941, %v1028
        %v1030 = vpop.f32.mrf.mxu0
        %1031 = vmatprep.mubr.bf16.mxu0 0
        %1032 = vmatmul.mubr.bf16.gmra.mxu0 %v637
        %v1033 = vpop.f32.mrf.mxu0
        %v1034 = vadd.f32 %v941, %v1033
        %v1035 = vpop.f32.mrf.mxu0
        %v1036 = vpop.f32.mrf.mxu0
        %v1037 = vadd.f32 %v941, %v1036
        %v1038 = vpop.f32.mrf.mxu0
        %1039 = vdwg.mxu0
        %1040 = vst [vmem:[%s338] sm:$0xff] %v978
        %1041 = vst [vmem:[%s338 + $0x8] sm:$0xff] %v981
        %1042 = vst [vmem:[%s338 + $0x10] sm:$0xff] %v986
        %1043 = vst [vmem:[%s338 + $0x18] sm:$0xff] %v989
        %1044 = vst [vmem:[%s338 + $0x20] sm:$0xff] %v994
        %1045 = vst [vmem:[%s338 + $0x28] sm:$0xff] %v997
        %1046 = vst [vmem:[%s338 + $0x30] sm:$0xff] %v1002
        %1047 = vst [vmem:[%s338 + $0x38] sm:$0xff] %v1005
        %1048 = vst [vmem:[%s338 + $0x40] sm:$0xff] %v1010
        %1049 = vst [vmem:[%s338 + $0x48] sm:$0xff] %v1013
        %1050 = vst [vmem:[%s338 + $0x50] sm:$0xff] %v1018
        %1051 = vst [vmem:[%s338 + $0x58] sm:$0xff] %v1021
        %1052 = vst [vmem:[%s338 + $0x60] sm:$0xff] %v1026
        %1053 = vst [vmem:[%s338 + $0x68] sm:$0xff] %v1029
        %1054 = vst [vmem:[%s338 + $0x70] sm:$0xff] %v1034
        %1055 = vst [vmem:[%s338 + $0x78] sm:$0xff] %v1037
        %s1056 = sand.u32 %s171, 1
        %s1057 = scalar_lea.sflag [#allocation4], %s1056
        %s1058 = sand.u32 %s171, 1
        %s1059 = smul.addr %s1058, 128
        %s1060 = scalar_lea.vmem [#allocation10], %s1059
        // Predicated region
        $region61: #{tpu_custom_call.1} parent=43 // pred_check
          %p1061 = pneg %p181
        $region62: #{tpu_custom_call.1} parent=43 // pred_check_branch
          %1063 = sbr.rel (%p1061) target = $region64
        $region63: #{tpu_custom_call.1} parent=43 // pred_region
          %s1064 = smul.u32 16, %s27
          %s1066 = ssub.s32 2048, 2048
          %1067 = vsyncadd %s1057, %s1066
          %s1068 = smul.addr %s1064, 128
          %s1069 = scalar_lea.hbm %s6, %s1068
          %s1070 = sshll.u32 %s1060, 4
          %s1071 = int_to_ptr.vmem [resolvable:$true] %s1070
          %1076 = dma.vmem_to_hbm [thread:$0]  %s1071, 2048, %s1069, %s1057, 128, 128, 8
        $region64: #{tpu_custom_call.1} parent=43 // pred_fallthru
          _
      $region44: #{tpu_custom_call.1} parent=5 // pred_fallthru
        _
      %p1077 = scmp.le.s32.totalorder 2, %s22
      // Predicated region
      $region65: #{tpu_custom_call.1} parent=5 // pred_check
        %p1078 = pneg %p1077
      $region66: #{tpu_custom_call.1} parent=5 // pred_check_branch
        %1080 = sbr.rel (%p1078) target = $region68
      $region67: #{tpu_custom_call.1} parent=5 // pred_region
        %s1081 = ssub.s32 %s22, 2
        // Predicated region
        $region69: #{tpu_custom_call.1} parent=67 // pred_check
          %p1082 = pneg %p187
        $region70: #{tpu_custom_call.1} parent=67 // pred_check_branch
          %1084 = sbr.rel (%p1082) target = $region72
        $region71: #{tpu_custom_call.1} parent=67 // pred_region
          %s1085 = sand.u32 %s172, 1
          %s1086 = scalar_lea.sflag [#allocation4], %s1085
          %s1087 = sand.u32 %s172, 1
          %s1088 = smul.addr %s1087, 128
          %s1089 = scalar_lea.vmem [#allocation10], %s1088
          %1090 = dma.done %s1086, 2048
        $region72: #{tpu_custom_call.1} parent=67 // pred_fallthru
          _
      $region68: #{tpu_custom_call.1} parent=5 // pred_fallthru
        _
    $region6: #{tpu_custom_call.1} parent=1 // loop_footer
      %s26 = sadd.s32 1, %s22
    $region7: #{tpu_custom_call.1} parent=1 // loop_footer_branch
      %21 = sbr.rel target = $region3
    $region8: #{tpu_custom_call.1} parent=1 // loop_exit
      _
    %1091 = vsyncpa [#allocation3], 1
    %s1092 = scalar_lea.sflag [#allocation3], 1
    %1093 = vsyncpa %s1092, 1
    %1094 = vsyncpa [#allocation6], 1
    %s1095 = scalar_lea.sflag [#allocation6], 1
    %1096 = vsyncpa %s1095, 1
    %1097 = vsyncpa [#allocation9], 1
    %1098 = vsyncpa [#allocation4], 1
    %s1099 = scalar_lea.sflag [#allocation4], 1
    %1100 = vsyncpa %s1099, 1

</llo_original>
